<compile_context>
chip_gen: v7x
topology: tpu7x:2x2x1
jax: 0.10.0
libtpu: 0.0.40
codegen_flags: <defaults>
</compile_context>

<pallas_src>
import jax
import jax.numpy as jnp
from jax.experimental import pallas as pl
from jax.experimental.pallas import tpu as pltpu

_MIB = 1024 * 1024


def _round_up(a: int, b: int) -> int:
    return (a + b - 1) // b * b


def _vmem_capacity_bytes() -> int:
    """Physical VMEM capacity; conservative 64 MiB fallback if query fails."""
    try:
        return int(pltpu.get_tpu_info().vmem_capacity_bytes)
    except Exception:
        return 64 * _MIB


def _llama_mlp_kernel(x_ref, wgu_ref, wd_ref, o_ref, acc_ref):
    # x_ref:   (tm, H)       activation tile, original dtype (cast in-kernel)
    # wgu_ref: (H, 2*ti)     fused [gate_k | up_k] weight tile (bf16)
    # wd_ref:  (ti, H)       down_proj weight tile (transposed, bf16)
    # o_ref:   (tm, H)       output tile (written at last k)
    # acc_ref: (tm, H) f32   accumulator scratch
    k = pl.program_id(1)
    ti = wd_ref.shape[0]  # static

    @pl.when(k == 0)
    def _():
        acc_ref[...] = jnp.zeros_like(acc_ref)

    w_dtype = wgu_ref.dtype
    x = x_ref[...].astype(w_dtype)  # in-kernel cast, no wrapper HBM round-trip

    # Fused gate/up projection: one wide MXU pass, f32 accumulation.
    gu = jnp.dot(x, wgu_ref[...], preferred_element_type=jnp.float32)
    gate = gu[:, :ti]
    up = gu[:, ti:]

    # Exact SiLU: the EUP has large slack vs the MXU here, so exact sigmoid
    # is free compared to the approx-reciprocal variant.
    h = (jax.nn.silu(gate) * up).astype(w_dtype)  # bf16 for the down GEMM

    acc_ref[...] += jnp.dot(h, wd_ref[...], preferred_element_type=jnp.float32)

    @pl.when(k == pl.num_programs(1) - 1)
    def _():
        o_ref[...] = acc_ref[...].astype(o_ref.dtype)


def prepare_llama_mlp_weights(gate_w, up_w, down_w, *, ti=None,
                              compute_dtype=jnp.bfloat16):
    """One-time weight packing (do this at model load, not per forward).

    gate_w, up_w: (I, H) PyTorch nn.Linear layout (out, in)
    down_w:       (H, I)

    Returns:
      wgu:  (nk, H, 2*ti) — per k-tile [gate tile | up tile], contiguous, bf16
      wd_t: (I_pad, H)    — down_proj.weight.T, zero-padded along I, bf16
      ti:   effective intermediate tile size
    """
    I, H = gate_w.shape
    assert up_w.shape == (I, H)
    assert down_w.shape == (H, I)

    if ti is None:
        # Generation/size-aware default: keep double-buffered weight tiles
        # well inside scoped VMEM (12*H*ti bytes total for wgu + wd tiles).
        vmem_cap = _vmem_capacity_bytes()
        if vmem_cap >= 100 * _MIB:      # v5e / v6e (128 MiB physical)
            ti = 1024 if H <= 4096 else 512
        else:                           # v7x-class (64 MiB per TC)
            ti = 512 if H <= 4096 else 256
    ti = max(128, min(ti, _round_up(I, 128)))
    I_pad = _round_up(I, ti)
    nk = I_pad // ti
    pad = I_pad - I

    wg_t = jnp.pad(gate_w, ((0, pad), (0, 0))).T.astype(compute_dtype)  # (H, I_pad)
    wu_t = jnp.pad(up_w, ((0, pad), (0, 0))).T.astype(compute_dtype)    # (H, I_pad)
    wd_t = jnp.pad(down_w, ((0, 0), (0, pad))).T.astype(compute_dtype)  # (I_pad, H)

    # Pack per-k weight tiles contiguously: wgu[k] == [gate tile k | up tile k]
    # as one (H, 2*ti) slab, so each grid-step weight DMA is a single
    # contiguous HBM region.
    wg_k = wg_t.reshape(H, nk, ti).transpose(1, 0, 2)   # (nk, H, ti)
    wu_k = wu_t.reshape(H, nk, ti).transpose(1, 0, 2)   # (nk, H, ti)
    wgu = jnp.concatenate([wg_k, wu_k], axis=-1)        # (nk, H, 2*ti)
    return wgu, wd_t, ti


def llama_mlp(x, wgu, wd_t, *, ti, tm=None):
    """x: (batch, seq, hidden); wgu/wd_t from prepare_llama_mlp_weights."""
    batch, seq, hidden = x.shape
    I_pad, H = wd_t.shape
    nk, Hw, two_ti = wgu.shape
    assert H == hidden and Hw == hidden
    assert two_ti == 2 * ti and nk * ti == I_pad

    w_dtype = wgu.dtype
    out_dtype = x.dtype
    x_bytes = jnp.dtype(x.dtype).itemsize
    w_bytes = jnp.dtype(w_dtype).itemsize
    o_bytes = jnp.dtype(out_dtype).itemsize

    # Generation-aware scoped-VMEM request: leave headroom for Mosaic internal
    # scratch/semaphores (~52-56 MiB on 64-MiB chips, ~105-110 MiB on 128-MiB).
    vmem_cap = _vmem_capacity_bytes()
    vmem_limit = max(32 * _MIB, int(min(vmem_cap - 12 * _MIB, 0.85 * vmem_cap)))

    M = batch * seq
    if tm is None:
        # Big M tiles are the primary lever: weight re-streaming ~ M_pad/tm.
        tm = 1024 if vmem_cap >= 100 * _MIB else 512
    tm_eff = max(16, min(tm, _round_up(M, 16)))   # bf16 min sublane tile = 16

    # On v7x-class chips (64 MiB VMEM, 2 TCs) a single M block leaves one core
    # idle; split into two blocks when M permits.
    if vmem_cap < 100 * _MIB and _round_up(M, tm_eff) // tm_eff == 1 and M >= 32:
        tm_eff = max(16, _round_up((M + 1) // 2, 16))

    def _working_set(t):
        return (2 * t * hidden * x_bytes            # x tiles (double-buffered)
                + 2 * hidden * 2 * ti * w_bytes     # wgu tiles
                + 2 * ti * hidden * w_bytes         # wd tiles
                + 2 * t * hidden * o_bytes          # out tiles
                + t * hidden * 4)                   # f32 accumulator

    # Shrink tm until the double-buffered working set fits the scoped limit.
    while tm_eff > 128 and _working_set(tm_eff) > int(0.9 * vmem_limit):
        tm_eff = max(128, tm_eff // 2)

    M_pad = _round_up(M, tm_eff)

    x2d = x.reshape(M, hidden)           # keep original dtype; cast in-kernel
    if M_pad != M:
        x2d = jnp.pad(x2d, ((0, M_pad - M), (0, 0)))

    n_m = M_pad // tm_eff
    grid = (n_m, nk)

    # Advisory cost estimate reflecting actual traffic: weights are streamed
    # once per M block, not once total.
    cost = pl.CostEstimate(
        flops=6 * M_pad * hidden * I_pad,
        transcendentals=2 * M_pad * I_pad,          # exp + divide per element
        bytes_accessed=(M_pad * hidden * x_bytes
                        + n_m * (wgu.size + wd_t.size) * w_bytes
                        + M_pad * hidden * o_bytes),
    )

    out2d = pl.pallas_call(
        _llama_mlp_kernel,
        out_shape=jax.ShapeDtypeStruct((M_pad, hidden), out_dtype),
        grid_spec=pltpu.PrefetchScalarGridSpec(
            num_scalar_prefetch=0,
            grid=grid,
            in_specs=[
                pl.BlockSpec((tm_eff, hidden), lambda i, k: (i, 0)),
                # Leading (nk) dim squeezed; each k-tile is one contiguous slab.
                pl.BlockSpec((None, hidden, 2 * ti), lambda i, k: (k, 0, 0)),
                pl.BlockSpec((ti, hidden), lambda i, k: (k, 0)),
            ],
            out_specs=pl.BlockSpec((tm_eff, hidden), lambda i, k: (i, 0)),
            scratch_shapes=[pltpu.VMEM((tm_eff, hidden), jnp.float32)],
        ),
        compiler_params=pltpu.CompilerParams(
            dimension_semantics=("parallel", "arbitrary"),
            vmem_limit_bytes=vmem_limit,
            # Let XLA fuse the activation pad/reshape producer into the call
            # instead of materializing it in HBM first.
            allow_input_fusion=[True, False, False],
        ),
        cost_estimate=cost,
    )(x2d, wgu, wd_t)

    return out2d[:M].reshape(batch, seq, hidden)


def llama_mlp_ref(x, gate_w, up_w, down_w):
    gate = jnp.einsum("bsh,ih->bsi", x, gate_w)
    up = jnp.einsum("bsh,ih->bsi", x, up_w)
    h = jax.nn.silu(gate) * up
    return jnp.einsum("bsi,hi->bsh", h, down_w)


if __name__ == "__main__":
    # Small but TPU-tile-friendly shapes (hidden/intermediate multiples of 128).
    batch, seq = 2, 8
    hidden, intermediate = 128, 256

    key = jax.random.PRNGKey(0)
    kx, kg, ku, kd = jax.random.split(key, 4)

    x = jax.random.normal(kx, (batch, seq, hidden), dtype=jnp.float32)
    # PyTorch nn.Linear convention: weight shape (out_features, in_features).
    gate_w = jax.random.normal(kg, (intermediate, hidden), jnp.float32) * 0.05
    up_w = jax.random.normal(ku, (intermediate, hidden), jnp.float32) * 0.05
    down_w = jax.random.normal(kd, (hidden, intermediate), jnp.float32) * 0.05

    # One-time weight packing (load time).
    wgu, wd_t, ti = prepare_llama_mlp_weights(gate_w, up_w, down_w)

    out = llama_mlp(x, wgu, wd_t, ti=ti)
    out = jax.block_until_ready(out)

    ref = llama_mlp_ref(x, gate_w, up_w, down_w)
    assert out.shape == (batch, seq, hidden)
    max_err = float(jnp.max(jnp.abs(out - ref)))
    # bf16 GEMMs vs f32 reference.
    assert jnp.allclose(out, ref, atol=2e-2, rtol=2e-2), (
        f"mismatch vs reference (max abs err {max_err})")

    print("KERNEL_OK")
</pallas_src>

<mosaic_0001>
module attributes {stable_mosaic.version = 11 : i64} {
  func.func @_llama_mlp_kernel(%arg0: i32, %arg1: i32, %arg2: memref<16x128xf32, #tpu.memory_space<vmem>>, %arg3: memref<1x128x512xbf16, #tpu.memory_space<vmem>>, %arg4: memref<256x128xbf16, #tpu.memory_space<vmem>>, %arg5: memref<16x128xf32, #tpu.memory_space<vmem>>, %arg6: memref<16x128xf32, #tpu.memory_space<vmem>>) attributes {dimension_semantics = [#tpu.dimension_semantics<parallel>, #tpu.dimension_semantics<arbitrary>], iteration_bounds = array<i64: 1, 1>, scalar_prefetch = 0 : i64, scratch_operands = 1 : i64, tpu.core_type = #tpu.core_type<tc>, window_params = [{transform_indices = @transform_0, window_bounds = array<i64: 16, 128>}, {transform_indices = @transform_1, window_bounds = array<i64: 1, 128, 512>}, {transform_indices = @transform_2, window_bounds = array<i64: 256, 128>}, {transform_indices = @transform_3, window_bounds = array<i64: 16, 128>}]} {
    %c0_i32 = arith.constant 0 : i32
    %0 = arith.cmpi eq, %arg1, %c0_i32 : i32
    %1 = arith.extui %0 : i1 to i32
    %c0_i32_0 = arith.constant 0 : i32
    %2 = arith.cmpi ne, %1, %c0_i32_0 : i32
    scf.if %2 {
      %cst_15 = arith.constant 0.000000e+00 : f32
      %26 = vector.broadcast %cst_15 : f32 to vector<16x128xf32>
      %c0_16 = arith.constant 0 : index
      %c0_17 = arith.constant 0 : index
      %27 = vector.load %arg6[%c0_16, %c0_17] : memref<16x128xf32, #tpu.memory_space<vmem>>, vector<16x128xf32>
      tpu.vector_store %arg6[%c0_16, %c0_17], %26 {strides = array<i32>} : memref<16x128xf32, #tpu.memory_space<vmem>>, vector<16x128xf32>,
    } else {
    }
    %c0 = arith.constant 0 : index
    %c0_1 = arith.constant 0 : index
    %3 = vector.load %arg2[%c0, %c0_1] : memref<16x128xf32, #tpu.memory_space<vmem>>, vector<16x128xf32>
    %4 = arith.truncf %3 : vector<16x128xf32> to vector<16x128xbf16>
    %c0_2 = arith.constant 0 : index
    %c0_3 = arith.constant 0 : index
    %c0_4 = arith.constant 0 : index
    %5 = vector.load %arg3[%c0_2, %c0_3, %c0_4] : memref<1x128x512xbf16, #tpu.memory_space<vmem>>, vector<1x128x512xbf16>
    %6 = vector.shape_cast %5 : vector<1x128x512xbf16> to vector<128x512xbf16>
    %cst = arith.constant dense<0.000000e+00> : vector<16x512xf32>
    %7 = tpu.matmul %4, %6, %cst {dimension_numbers = #tpu.dot_dimension_numbers<[1], [0], [0], [1], [0, 0, 1, 1], [], []>} : vector<16x128xbf16>, vector<128x512xbf16>, vector<16x512xf32> -> vector<16x512xf32>
    %8 = vector.extract_strided_slice %7 {offsets = [0, 0], sizes = [16, 256], strides = [1, 1]} : vector<16x512xf32> to vector<16x256xf32>
    %9 = vector.extract_strided_slice %7 {offsets = [0, 256], sizes = [16, 256], strides = [1, 1]} : vector<16x512xf32> to vector<16x256xf32>
    %10 = arith.negf %8 : vector<16x256xf32>
    %11 = math.exp %10 : vector<16x256xf32>
    %cst_5 = arith.constant 1.000000e+00 : f32
    %12 = vector.broadcast %cst_5 : f32 to vector<16x256xf32>
    %13 = arith.addf %12, %11 : vector<16x256xf32>
    %14 = arith.divf %12, %13 : vector<16x256xf32>
    %15 = arith.mulf %8, %14 : vector<16x256xf32>
    %16 = arith.mulf %15, %9 : vector<16x256xf32>
    %17 = arith.truncf %16 : vector<16x256xf32> to vector<16x256xbf16>
    %c0_6 = arith.constant 0 : index
    %c0_7 = arith.constant 0 : index
    %18 = vector.load %arg6[%c0_6, %c0_7] : memref<16x128xf32, #tpu.memory_space<vmem>>, vector<16x128xf32>
    %c0_8 = arith.constant 0 : index
    %c0_9 = arith.constant 0 : index
    %19 = vector.load %arg4[%c0_8, %c0_9] : memref<256x128xbf16, #tpu.memory_space<vmem>>, vector<256x128xbf16>
    %cst_10 = arith.constant dense<0.000000e+00> : vector<16x128xf32>
    %20 = tpu.matmul %17, %19, %cst_10 {dimension_numbers = #tpu.dot_dimension_numbers<[1], [0], [0], [1], [0, 0, 1, 1], [], []>} : vector<16x256xbf16>, vector<256x128xbf16>, vector<16x128xf32> -> vector<16x128xf32>
    %21 = arith.addf %18, %20 : vector<16x128xf32>
    %c0_11 = arith.constant 0 : index
    %c0_12 = arith.constant 0 : index
    %22 = vector.load %arg6[%c0_11, %c0_12] : memref<16x128xf32, #tpu.memory_space<vmem>>, vector<16x128xf32>
    tpu.vector_store %arg6[%c0_11, %c0_12], %21 {strides = array<i32>} : memref<16x128xf32, #tpu.memory_space<vmem>>, vector<16x128xf32>,
    %c0_i32_13 = arith.constant 0 : i32
    %23 = arith.cmpi eq, %arg1, %c0_i32_13 : i32
    %24 = arith.extui %23 : i1 to i32
    %c0_i32_14 = arith.constant 0 : i32
    %25 = arith.cmpi ne, %24, %c0_i32_14 : i32
    scf.if %25 {
      %c0_15 = arith.constant 0 : index
      %c0_16 = arith.constant 0 : index
      %26 = vector.load %arg6[%c0_15, %c0_16] : memref<16x128xf32, #tpu.memory_space<vmem>>, vector<16x128xf32>
      %c0_17 = arith.constant 0 : index
      %c0_18 = arith.constant 0 : index
      %27 = vector.load %arg5[%c0_17, %c0_18] : memref<16x128xf32, #tpu.memory_space<vmem>>, vector<16x128xf32>
      tpu.vector_store %arg5[%c0_17, %c0_18], %26 {strides = array<i32>} : memref<16x128xf32, #tpu.memory_space<vmem>>, vector<16x128xf32>,
    } else {
    }
    return
  }
  func.func @transform_0(%arg0: i32, %arg1: i32) -> (i32, i32) {
    %c0_i32 = arith.constant 0 : i32
    %c0_i32_0 = arith.constant 0 : i32
    return %arg0, %c0_i32 : i32, i32
  }
  func.func @transform_1(%arg0: i32, %arg1: i32) -> (i32, i32, i32) {
    %c0_i32 = arith.constant 0 : i32
    %c0_i32_0 = arith.constant 0 : i32
    %c0_i32_1 = arith.constant 0 : i32
    return %arg1, %c0_i32, %c0_i32_0 : i32, i32, i32
  }
  func.func @transform_2(%arg0: i32, %arg1: i32) -> (i32, i32) {
    %c0_i32 = arith.constant 0 : i32
    %c0_i32_0 = arith.constant 0 : i32
    return %arg1, %c0_i32 : i32, i32
  }
  func.func @transform_3(%arg0: i32, %arg1: i32) -> (i32, i32) {
    %c0_i32 = arith.constant 0 : i32
    %c0_i32_0 = arith.constant 0 : i32
    return %arg0, %c0_i32 : i32, i32
  }
}

</mosaic_0001>

<llo_original>
// kernel: tpu_custom_call.1
$region0: #{tpu_custom_call.1}
  #allocation0 [shape = 'u32[]', space=smem, size = 0x4, offset = 0x4, fixed_abs, tag = 'smem constant byte address 0x4 - core index']
  #allocation1 [shape = 'u32[144,128]{1,0:T(1,128)}', space=vmem, size = 0x12000, scoped, tag = 'internal scratch']
  #allocation2 [shape = 'f32[16,128]{1,0:T(8,128)}', space=vmem, size = 0x2000, scoped, tag = 'scratch operand']
  %s0 = inlined_call_operand.hbm [shape: f32[16,128], index: 0, kind: input, shape index: {}]
  %s1 = inlined_call_operand.hbm [shape: bf16[1,128,512], index: 1, kind: input, shape index: {}]
  %s2 = inlined_call_operand.hbm [shape: bf16[256,128], index: 2, kind: input, shape index: {}]
  %s3 = inlined_call_operand.hbm [shape: f32[16,128], index: 3, kind: output, shape index: {}]
  %s4 = sld [smem:[#allocation0]]
  $region42: #{tpu_custom_call.1} parent=0
    _
  %s6 = ssub.s32 1, %s4
  %s7 = scalar_select 0, %s6, %s4
  $region1: #{tpu_custom_call.1} parent=0
    #allocation3 [shape = 'u8[8192]{0}', space=vmem, size = 0x2000, scoped, tag = 'input window, operand 0, single buffered']
    #allocation4 [shape = 's32[1]{0}', space=sflag, size = 0x4, scoped, tag = 'scoped memory for tpu_custom_call.1']
    #allocation5 [shape = 's32[1]{0}', space=sflag, size = 0x4, scoped, tag = 'scoped memory for tpu_custom_call.1']
    #allocation6 [shape = 'u8[131072]{0}', space=vmem, size = 0x20000, scoped, tag = 'input window, operand 1, single buffered']
    #allocation7 [shape = 's32[1]{0}', space=sflag, size = 0x4, scoped, tag = 'scoped memory for tpu_custom_call.1']
    #allocation8 [shape = 'u8[65536]{0}', space=vmem, size = 0x10000, scoped, tag = 'input window, operand 2, single buffered']
    #allocation9 [shape = 'u8[8192]{0}', space=vmem, size = 0x2000, scoped, tag = 'output window, operand 0, single buffered']
    %8 = vsyncpa [#allocation4], 0
    %9 = vsyncpa [#allocation7], 0
    %10 = vsyncpa [#allocation5], 0
    // Predicated region
    $region2: #{tpu_custom_call.1} parent=1 // pred_check
      _
    $region3: #{tpu_custom_call.1} parent=1 // pred_check_branch
      %12 = sbr.rel (0) target = $region5
    $region4: #{tpu_custom_call.1} parent=1 // pred_region
      %s14 = ssub.s32 256, 256
      %15 = vsyncadd [#allocation4], %s14
      %s16 = sshll.u32 [#allocation3], 4
      %s17 = int_to_ptr.vmem [resolvable:$true] %s16
      %22 = dma.hbm_to_vmem [thread:$0]  %s0, 256, %s17, [#allocation4], 128, 128, 8
    $region5: #{tpu_custom_call.1} parent=1 // pred_fallthru
      _
    // Predicated region
    $region6: #{tpu_custom_call.1} parent=1 // pred_check
      _
    $region7: #{tpu_custom_call.1} parent=1 // pred_check_branch
      %24 = sbr.rel (0) target = $region9
    $region8: #{tpu_custom_call.1} parent=1 // pred_region
      %s26 = ssub.s32 4096, 4096
      %27 = vsyncadd [#allocation7], %s26
      %s28 = sshll.u32 [#allocation6], 4
      %s29 = int_to_ptr.vmem [resolvable:$true] %s28
      %34 = dma.hbm_to_vmem [thread:$0]  %s1, 4096, %s29, [#allocation7], 256, 256, 16
    $region9: #{tpu_custom_call.1} parent=1 // pred_fallthru
      _
    // Predicated region
    $region10: #{tpu_custom_call.1} parent=1 // pred_check
      _
    $region11: #{tpu_custom_call.1} parent=1 // pred_check_branch
      %36 = sbr.rel (0) target = $region13
    $region12: #{tpu_custom_call.1} parent=1 // pred_region
      %s38 = ssub.s32 2048, 2048
      %39 = vsyncadd [#allocation7], %s38
      %s40 = sshll.u32 [#allocation8], 4
      %s41 = int_to_ptr.vmem [resolvable:$true] %s40
      %46 = dma.hbm_to_vmem [thread:$0]  %s2, 2048, %s41, [#allocation7], 64, 64, 4
    $region13: #{tpu_custom_call.1} parent=1 // pred_fallthru
      _
    // Predicated region
    $region14: #{tpu_custom_call.1} parent=1 // pred_check
      _
    $region15: #{tpu_custom_call.1} parent=1 // pred_check_branch
      %48 = sbr.rel (0) target = $region17
    $region16: #{tpu_custom_call.1} parent=1 // pred_region
      %49 = dma.done [#allocation4], 256
    $region17: #{tpu_custom_call.1} parent=1 // pred_fallthru
      _
    // Predicated region
    $region18: #{tpu_custom_call.1} parent=1 // pred_check
      _
    $region19: #{tpu_custom_call.1} parent=1 // pred_check_branch
      %51 = sbr.rel (0) target = $region21
    $region20: #{tpu_custom_call.1} parent=1 // pred_region
      %52 = dma.done [#allocation7], 4096
    $region21: #{tpu_custom_call.1} parent=1 // pred_fallthru
      _
    // Predicated region
    $region22: #{tpu_custom_call.1} parent=1 // pred_check
      _
    $region23: #{tpu_custom_call.1} parent=1 // pred_check_branch
      %54 = sbr.rel (0) target = $region25
    $region24: #{tpu_custom_call.1} parent=1 // pred_region
      %55 = dma.done [#allocation7], 2048
    $region25: #{tpu_custom_call.1} parent=1 // pred_fallthru
      _
    %p57 = scmp.eq.s32.totalorder 0, 0
    // Predicated region
    $region26: #{tpu_custom_call.1} parent=1 // pred_check
      %p58 = pneg %p57
    $region27: #{tpu_custom_call.1} parent=1 // pred_check_branch
      %60 = sbr.rel (%p58) target = $region29
    $region28: #{tpu_custom_call.1} parent=1 // pred_region
      %61 = vst [vmem:[#allocation2] sm:$0xff] 0.0
      %62 = vst [vmem:[#allocation2 + $0x8] sm:$0xff] 0.0
    $region29: #{tpu_custom_call.1} parent=1 // pred_fallthru
      _
    %v63 = vld [vmem:[#allocation3] sm:$0xff]
    %v64 = vld [vmem:[#allocation3 + $0x8] sm:$0xff]
    %v65 = vpack.c.bf16 %v64, %v63
    %v66 = vld [vmem:[#allocation6] sm:$0xff]
    %v67 = vld [vmem:[#allocation6 + $0x8] sm:$0xff]
    %v68 = vld [vmem:[#allocation6 + $0x10] sm:$0xff]
    %v69 = vld [vmem:[#allocation6 + $0x18] sm:$0xff]
    %v70 = vld [vmem:[#allocation6 + $0x20] sm:$0xff]
    %v71 = vld [vmem:[#allocation6 + $0x28] sm:$0xff]
    %v72 = vld [vmem:[#allocation6 + $0x30] sm:$0xff]
    %v73 = vld [vmem:[#allocation6 + $0x38] sm:$0xff]
    %v74 = vld [vmem:[#allocation6 + $0x40] sm:$0xff]
    %v75 = vld [vmem:[#allocation6 + $0x48] sm:$0xff]
    %v76 = vld [vmem:[#allocation6 + $0x50] sm:$0xff]
    %v77 = vld [vmem:[#allocation6 + $0x58] sm:$0xff]
    %v78 = vld [vmem:[#allocation6 + $0x60] sm:$0xff]
    %v79 = vld [vmem:[#allocation6 + $0x68] sm:$0xff]
    %v80 = vld [vmem:[#allocation6 + $0x70] sm:$0xff]
    %v81 = vld [vmem:[#allocation6 + $0x78] sm:$0xff]
    %v82 = vld [vmem:[#allocation6 + $0x80] sm:$0xff]
    %v83 = vld [vmem:[#allocation6 + $0x88] sm:$0xff]
    %v84 = vld [vmem:[#allocation6 + $0x90] sm:$0xff]
    %v85 = vld [vmem:[#allocation6 + $0x98] sm:$0xff]
    %v86 = vld [vmem:[#allocation6 + $0xa0] sm:$0xff]
    %v87 = vld [vmem:[#allocation6 + $0xa8] sm:$0xff]
    %v88 = vld [vmem:[#allocation6 + $0xb0] sm:$0xff]
    %v89 = vld [vmem:[#allocation6 + $0xb8] sm:$0xff]
    %v90 = vld [vmem:[#allocation6 + $0xc0] sm:$0xff]
    %v91 = vld [vmem:[#allocation6 + $0xc8] sm:$0xff]
    %v92 = vld [vmem:[#allocation6 + $0xd0] sm:$0xff]
    %v93 = vld [vmem:[#allocation6 + $0xd8] sm:$0xff]
    %v94 = vld [vmem:[#allocation6 + $0xe0] sm:$0xff]
    %v95 = vld [vmem:[#allocation6 + $0xe8] sm:$0xff]
    %v96 = vld [vmem:[#allocation6 + $0xf0] sm:$0xff]
    %v97 = vld [vmem:[#allocation6 + $0xf8] sm:$0xff]
    %v130 = vunpack.c.l.b16 %v66
    %v131 = vunpack.c.h.b16 %v66
    %v132 = vunpack.c.l.b16 %v67
    %v133 = vunpack.c.h.b16 %v67
    %v134 = vunpack.c.l.b16 %v68
    %v135 = vunpack.c.h.b16 %v68
    %v136 = vunpack.c.l.b16 %v69
    %v137 = vunpack.c.h.b16 %v69
    %v138 = vunpack.c.l.b16 %v70
    %v139 = vunpack.c.h.b16 %v70
    %v140 = vunpack.c.l.b16 %v71
    %v141 = vunpack.c.h.b16 %v71
    %v142 = vunpack.c.l.b16 %v72
    %v143 = vunpack.c.h.b16 %v72
    %v144 = vunpack.c.l.b16 %v73
    %v145 = vunpack.c.h.b16 %v73
    %v146 = vunpack.c.l.b16 %v74
    %v147 = vunpack.c.h.b16 %v74
    %v148 = vunpack.c.l.b16 %v75
    %v149 = vunpack.c.h.b16 %v75
    %v150 = vunpack.c.l.b16 %v76
    %v151 = vunpack.c.h.b16 %v76
    %v152 = vunpack.c.l.b16 %v77
    %v153 = vunpack.c.h.b16 %v77
    %v154 = vunpack.c.l.b16 %v78
    %v155 = vunpack.c.h.b16 %v78
    %v156 = vunpack.c.l.b16 %v79
    %v157 = vunpack.c.h.b16 %v79
    %v158 = vunpack.c.l.b16 %v80
    %v159 = vunpack.c.h.b16 %v80
    %v160 = vunpack.c.l.b16 %v81
    %v161 = vunpack.c.h.b16 %v81
    %v162 = vunpack.c.l.b16 %v82
    %v163 = vunpack.c.h.b16 %v82
    %v164 = vunpack.c.l.b16 %v83
    %v165 = vunpack.c.h.b16 %v83
    %v166 = vunpack.c.l.b16 %v84
    %v167 = vunpack.c.h.b16 %v84
    %v168 = vunpack.c.l.b16 %v85
    %v169 = vunpack.c.h.b16 %v85
    %v170 = vunpack.c.l.b16 %v86
    %v171 = vunpack.c.h.b16 %v86
    %v172 = vunpack.c.l.b16 %v87
    %v173 = vunpack.c.h.b16 %v87
    %v174 = vunpack.c.l.b16 %v88
    %v175 = vunpack.c.h.b16 %v88
    %v176 = vunpack.c.l.b16 %v89
    %v177 = vunpack.c.h.b16 %v89
    %v178 = vunpack.c.l.b16 %v90
    %v179 = vunpack.c.h.b16 %v90
    %v180 = vunpack.c.l.b16 %v91
    %v181 = vunpack.c.h.b16 %v91
    %v182 = vunpack.c.l.b16 %v92
    %v183 = vunpack.c.h.b16 %v92
    %v184 = vunpack.c.l.b16 %v93
    %v185 = vunpack.c.h.b16 %v93
    %v186 = vunpack.c.l.b16 %v94
    %v187 = vunpack.c.h.b16 %v94
    %v188 = vunpack.c.l.b16 %v95
    %v189 = vunpack.c.h.b16 %v95
    %v190 = vunpack.c.l.b16 %v96
    %v191 = vunpack.c.h.b16 %v96
    %v192 = vunpack.c.l.b16 %v97
    %v193 = vunpack.c.h.b16 %v97
    %v194 = vpack.c.b16 %v134, %v130
    %v195 = vpack.c.b16 %v135, %v131
    %v196 = vpack.c.b16 %v136, %v132
    %v197 = vpack.c.b16 %v137, %v133
    %v198 = vpack.c.b16 %v142, %v138
    %v199 = vpack.c.b16 %v143, %v139
    %v200 = vpack.c.b16 %v144, %v140
    %v201 = vpack.c.b16 %v145, %v141
    %v202 = vpack.c.b16 %v150, %v146
    %v203 = vpack.c.b16 %v151, %v147
    %v204 = vpack.c.b16 %v152, %v148
    %v205 = vpack.c.b16 %v153, %v149
    %v206 = vpack.c.b16 %v158, %v154
    %v207 = vpack.c.b16 %v159, %v155
    %v208 = vpack.c.b16 %v160, %v156
    %v209 = vpack.c.b16 %v161, %v157
    %v210 = vpack.c.b16 %v166, %v162
    %v211 = vpack.c.b16 %v167, %v163
    %v212 = vpack.c.b16 %v168, %v164
    %v213 = vpack.c.b16 %v169, %v165
    %v214 = vpack.c.b16 %v174, %v170
    %v215 = vpack.c.b16 %v175, %v171
    %v216 = vpack.c.b16 %v176, %v172
    %v217 = vpack.c.b16 %v177, %v173
    %v218 = vpack.c.b16 %v182, %v178
    %v219 = vpack.c.b16 %v183, %v179
    %v220 = vpack.c.b16 %v184, %v180
    %v221 = vpack.c.b16 %v185, %v181
    %v222 = vpack.c.b16 %v190, %v186
    %v223 = vpack.c.b16 %v191, %v187
    %v224 = vpack.c.b16 %v192, %v188
    %v225 = vpack.c.b16 %v193, %v189
    %258 = vmatprep.subr.bf16.mxu0 %v195
    %259 = vmatpush1.bf16.msra.mxu0 %v194
    %260 = vmatprep.subr.bf16.mxu0 %v199
    %261 = vmatpush1.bf16.msra.mxu0 %v198
    %262 = vmatprep.subr.bf16.mxu0 %v203
    %263 = vmatpush1.bf16.msra.mxu0 %v202
    %264 = vmatprep.subr.bf16.mxu0 %v207
    %265 = vmatpush1.bf16.msra.mxu0 %v206
    %266 = vmatprep.subr.bf16.mxu0 %v211
    %267 = vmatpush1.bf16.msra.mxu0 %v210
    %268 = vmatprep.subr.bf16.mxu0 %v215
    %269 = vmatpush1.bf16.msra.mxu0 %v214
    %270 = vmatprep.subr.bf16.mxu0 %v219
    %271 = vmatpush1.bf16.msra.mxu0 %v218
    %272 = vmatprep.subr.bf16.mxu0 %v223
    %273 = vmatpush1.bf16.msra.mxu0 %v222
    %274 = vmatprep.subr.bf16.mxu0 0
    %275 = vmatpush1.bf16.msra.mxu0 0
    %276 = vmatprep.subr.bf16.mxu0 0
    %277 = vmatpush1.bf16.msra.mxu0 0
    %278 = vmatprep.subr.bf16.mxu0 0
    %279 = vmatpush1.bf16.msra.mxu0 0
    %280 = vmatprep.subr.bf16.mxu0 0
    %281 = vmatpush1.bf16.msra.mxu0 0
    %282 = vmatprep.subr.bf16.mxu0 0
    %283 = vmatpush1.bf16.msra.mxu0 0
    %284 = vmatprep.subr.bf16.mxu0 0
    %285 = vmatpush1.bf16.msra.mxu0 0
    %286 = vmatprep.subr.bf16.mxu0 0
    %287 = vmatpush1.bf16.msra.mxu0 0
    %288 = vmatprep.subr.bf16.mxu0 0
    %289 = vmatpush1.bf16.msra.mxu0 0
    %290 = vmatprep.mubr.bf16.mxu0 0
    %291 = vmatmul.mubr.bf16.gmra.mrb[0].mxu0 %v65
    %v292 = vpop.f32.mrb[0].mxu0
    %v293 = vadd.f32 0.0, %v292
    %v294 = vpop.f32.mrb[0].mxu0
    %v295 = vadd.f32 0.0, %v294
    %v296 = vpop.f32.mrb[0].mxu0
    %v297 = vadd.f32 0.0, %v296
    %v298 = vpop.f32.mrb[0].mxu0
    %v299 = vadd.f32 0.0, %v298
    %300 = vdwg.mxu0
    %301 = vmatprep.subr.bf16.mxu0 %v197
    %302 = vmatpush1.bf16.msra.mxu0 %v196
    %303 = vmatprep.subr.bf16.mxu0 %v201
    %304 = vmatpush1.bf16.msra.mxu0 %v200
    %305 = vmatprep.subr.bf16.mxu0 %v205
    %306 = vmatpush1.bf16.msra.mxu0 %v204
    %307 = vmatprep.subr.bf16.mxu0 %v209
    %308 = vmatpush1.bf16.msra.mxu0 %v208
    %309 = vmatprep.subr.bf16.mxu0 %v213
    %310 = vmatpush1.bf16.msra.mxu0 %v212
    %311 = vmatprep.subr.bf16.mxu0 %v217
    %312 = vmatpush1.bf16.msra.mxu0 %v216
    %313 = vmatprep.subr.bf16.mxu0 %v221
    %314 = vmatpush1.bf16.msra.mxu0 %v220
    %315 = vmatprep.subr.bf16.mxu0 %v225
    %316 = vmatpush1.bf16.msra.mxu0 %v224
    %317 = vmatprep.subr.bf16.mxu0 0
    %318 = vmatpush1.bf16.msra.mxu0 0
    %319 = vmatprep.subr.bf16.mxu0 0
    %320 = vmatpush1.bf16.msra.mxu0 0
    %321 = vmatprep.subr.bf16.mxu0 0
    %322 = vmatpush1.bf16.msra.mxu0 0
    %323 = vmatprep.subr.bf16.mxu0 0
    %324 = vmatpush1.bf16.msra.mxu0 0
    %325 = vmatprep.subr.bf16.mxu0 0
    %326 = vmatpush1.bf16.msra.mxu0 0
    %327 = vmatprep.subr.bf16.mxu0 0
    %328 = vmatpush1.bf16.msra.mxu0 0
    %329 = vmatprep.subr.bf16.mxu0 0
    %330 = vmatpush1.bf16.msra.mxu0 0
    %331 = vmatprep.subr.bf16.mxu0 0
    %332 = vmatpush1.bf16.msra.mxu0 0
    %333 = vmatprep.mubr.bf16.mxu0 0
    %334 = vmatmul.mubr.bf16.gmra.mrb[0].mxu0 %v65
    %v335 = vpop.f32.mrb[0].mxu0
    %v336 = vadd.f32 0.0, %v335
    %v337 = vpop.f32.mrb[0].mxu0
    %v338 = vadd.f32 0.0, %v337
    %v339 = vpop.f32.mrb[0].mxu0
    %v340 = vadd.f32 0.0, %v339
    %v341 = vpop.f32.mrb[0].mxu0
    %v342 = vadd.f32 0.0, %v341
    %343 = vdwg.mxu0
    %v344 = vxor.u32 %v293, 2147483648
    %v345 = vxor.u32 %v295, 2147483648
    %v346 = vxor.u32 %v297, 2147483648
    %v347 = vxor.u32 %v299, 2147483648
    %v348 = vmul.f32 %v344, 1.442695
    %v349 = vpow.pop %v348
    %v350 = vmul.f32 %v345, 1.442695
    %v351 = vpow.pop %v350
    %v352 = vmul.f32 %v346, 1.442695
    %v353 = vpow.pop %v352
    %v354 = vmul.f32 %v347, 1.442695
    %v355 = vpow.pop %v354
    %v356 = vadd.f32 %v349, 1.0
    %v357 = vadd.f32 %v351, 1.0
    %v358 = vadd.f32 %v353, 1.0
    %v359 = vadd.f32 %v355, 1.0
    %v360 = vrcp.pop %v356
    %v361 = vmul.f32 1.0, %v360
    %v362 = vrcp.pop %v357
    %v363 = vmul.f32 1.0, %v362
    %v364 = vrcp.pop %v358
    %v365 = vmul.f32 1.0, %v364
    %v366 = vrcp.pop %v359
    %v367 = vmul.f32 1.0, %v366
    %v368 = vmul.f32 %v293, %v361
    %v369 = vmul.f32 %v295, %v363
    %v370 = vmul.f32 %v297, %v365
    %v371 = vmul.f32 %v299, %v367
    %v372 = vmul.f32 %v368, %v336
    %v373 = vmul.f32 %v369, %v338
    %v374 = vmul.f32 %v370, %v340
    %v375 = vmul.f32 %v371, %v342
    %v376 = vpack.c.bf16 %v374, %v372
    %v377 = vpack.c.bf16 %v375, %v373
    %v378 = vld [vmem:[#allocation2] sm:$0xff]
    %v379 = vld [vmem:[#allocation2 + $0x8] sm:$0xff]
    %v380 = vld [vmem:[#allocation8] sm:$0xf]
    %v381 = vld [vmem:[#allocation8 + $0x4] sm:$0xf]
    %v382 = vld [vmem:[#allocation8 + $0x8] sm:$0xf]
    %v383 = vld [vmem:[#allocation8 + $0xc] sm:$0xf]
    %v384 = vld [vmem:[#allocation8 + $0x10] sm:$0xf]
    %v385 = vld [vmem:[#allocation8 + $0x14] sm:$0xf]
    %v386 = vld [vmem:[#allocation8 + $0x18] sm:$0xf]
    %v387 = vld [vmem:[#allocation8 + $0x1c] sm:$0xf]
    %v388 = vld [vmem:[#allocation8 + $0x20] sm:$0xf]
    %v389 = vld [vmem:[#allocation8 + $0x24] sm:$0xf]
    %v390 = vld [vmem:[#allocation8 + $0x28] sm:$0xf]
    %v391 = vld [vmem:[#allocation8 + $0x2c] sm:$0xf]
    %v392 = vld [vmem:[#allocation8 + $0x30] sm:$0xf]
    %v393 = vld [vmem:[#allocation8 + $0x34] sm:$0xf]
    %v394 = vld [vmem:[#allocation8 + $0x38] sm:$0xf]
    %v395 = vld [vmem:[#allocation8 + $0x3c] sm:$0xf]
    %v396 = vld [vmem:[#allocation8 + $0x40] sm:$0xf]
    %v397 = vld [vmem:[#allocation8 + $0x44] sm:$0xf]
    %v398 = vld [vmem:[#allocation8 + $0x48] sm:$0xf]
    %v399 = vld [vmem:[#allocation8 + $0x4c] sm:$0xf]
    %v400 = vld [vmem:[#allocation8 + $0x50] sm:$0xf]
    %v401 = vld [vmem:[#allocation8 + $0x54] sm:$0xf]
    %v402 = vld [vmem:[#allocation8 + $0x58] sm:$0xf]
    %v403 = vld [vmem:[#allocation8 + $0x5c] sm:$0xf]
    %v404 = vld [vmem:[#allocation8 + $0x60] sm:$0xf]
    %v405 = vld [vmem:[#allocation8 + $0x64] sm:$0xf]
    %v406 = vld [vmem:[#allocation8 + $0x68] sm:$0xf]
    %v407 = vld [vmem:[#allocation8 + $0x6c] sm:$0xf]
    %v408 = vld [vmem:[#allocation8 + $0x70] sm:$0xf]
    %v409 = vld [vmem:[#allocation8 + $0x74] sm:$0xf]
    %v410 = vld [vmem:[#allocation8 + $0x78] sm:$0xf]
    %v411 = vld [vmem:[#allocation8 + $0x7c] sm:$0xf]
    %v444 = vunpack.c.l.b16 %v380
    %v445 = vunpack.c.l.b16 %v381
    %v446 = vunpack.c.l.b16 %v382
    %v447 = vunpack.c.l.b16 %v383
    %v448 = vunpack.c.l.b16 %v384
    %v449 = vunpack.c.l.b16 %v385
    %v450 = vunpack.c.l.b16 %v386
    %v451 = vunpack.c.l.b16 %v387
    %v452 = vunpack.c.l.b16 %v388
    %v453 = vunpack.c.l.b16 %v389
    %v454 = vunpack.c.l.b16 %v390
    %v455 = vunpack.c.l.b16 %v391
    %v456 = vunpack.c.l.b16 %v392
    %v457 = vunpack.c.l.b16 %v393
    %v458 = vunpack.c.l.b16 %v394
    %v459 = vunpack.c.l.b16 %v395
    %v460 = vunpack.c.l.b16 %v396
    %v461 = vunpack.c.l.b16 %v397
    %v462 = vunpack.c.l.b16 %v398
    %v463 = vunpack.c.l.b16 %v399
    %v464 = vunpack.c.l.b16 %v400
    %v465 = vunpack.c.l.b16 %v401
    %v466 = vunpack.c.l.b16 %v402
    %v467 = vunpack.c.l.b16 %v403
    %v468 = vunpack.c.l.b16 %v404
    %v469 = vunpack.c.l.b16 %v405
    %v470 = vunpack.c.l.b16 %v406
    %v471 = vunpack.c.l.b16 %v407
    %v472 = vunpack.c.l.b16 %v408
    %v473 = vunpack.c.l.b16 %v409
    %v474 = vunpack.c.l.b16 %v410
    %v475 = vunpack.c.l.b16 %v411
    %v476 = vpack.c.b16 %v445, %v444
    %v477 = vpack.c.b16 %v447, %v446
    %v478 = vpack.c.b16 %v449, %v448
    %v479 = vpack.c.b16 %v451, %v450
    %v480 = vpack.c.b16 %v453, %v452
    %v481 = vpack.c.b16 %v455, %v454
    %v482 = vpack.c.b16 %v457, %v456
    %v483 = vpack.c.b16 %v459, %v458
    %v484 = vpack.c.b16 %v461, %v460
    %v485 = vpack.c.b16 %v463, %v462
    %v486 = vpack.c.b16 %v465, %v464
    %v487 = vpack.c.b16 %v467, %v466
    %v488 = vpack.c.b16 %v469, %v468
    %v489 = vpack.c.b16 %v471, %v470
    %v490 = vpack.c.b16 %v473, %v472
    %v491 = vpack.c.b16 %v475, %v474
    %508 = vmatprep.subr.bf16.mxu0 0
    %509 = vmatpush1.bf16.msra.mxu0 %v476
    %510 = vmatprep.subr.bf16.mxu0 0
    %511 = vmatpush1.bf16.msra.mxu0 %v477
    %512 = vmatprep.subr.bf16.mxu0 0
    %513 = vmatpush1.bf16.msra.mxu0 %v478
    %514 = vmatprep.subr.bf16.mxu0 0
    %515 = vmatpush1.bf16.msra.mxu0 %v479
    %516 = vmatprep.subr.bf16.mxu0 0
    %517 = vmatpush1.bf16.msra.mxu0 %v480
    %518 = vmatprep.subr.bf16.mxu0 0
    %519 = vmatpush1.bf16.msra.mxu0 %v481
    %520 = vmatprep.subr.bf16.mxu0 0
    %521 = vmatpush1.bf16.msra.mxu0 %v482
    %522 = vmatprep.subr.bf16.mxu0 0
    %523 = vmatpush1.bf16.msra.mxu0 %v483
    %524 = vmatprep.subr.bf16.mxu0 0
    %525 = vmatpush1.bf16.msra.mxu0 %v484
    %526 = vmatprep.subr.bf16.mxu0 0
    %527 = vmatpush1.bf16.msra.mxu0 %v485
    %528 = vmatprep.subr.bf16.mxu0 0
    %529 = vmatpush1.bf16.msra.mxu0 %v486
    %530 = vmatprep.subr.bf16.mxu0 0
    %531 = vmatpush1.bf16.msra.mxu0 %v487
    %532 = vmatprep.subr.bf16.mxu0 0
    %533 = vmatpush1.bf16.msra.mxu0 %v488
    %534 = vmatprep.subr.bf16.mxu0 0
    %535 = vmatpush1.bf16.msra.mxu0 %v489
    %536 = vmatprep.subr.bf16.mxu0 0
    %537 = vmatpush1.bf16.msra.mxu0 %v490
    %538 = vmatprep.subr.bf16.mxu0 0
    %539 = vmatpush1.bf16.msra.mxu0 %v491
    %540 = vmatprep.mubr.bf16.mxu0 %v377
    %541 = vmatmul.mubr.bf16.gmra.mrb[0].mxu0 %v376
    %v542 = vpop.f32.mrb[0].mxu0
    %v543 = vadd.f32 0.0, %v542
    %v544 = vpop.f32.mrb[0].mxu0
    %v545 = vpop.f32.mrb[0].mxu0
    %v546 = vadd.f32 0.0, %v545
    %v547 = vpop.f32.mrb[0].mxu0
    %548 = vdwg.mxu0
    %v549 = vadd.f32 %v378, %v543
    %v550 = vadd.f32 %v379, %v546
    %551 = vst [vmem:[#allocation2] sm:$0xff] %v549
    %552 = vst [vmem:[#allocation2 + $0x8] sm:$0xff] %v550
    // Predicated region
    $region30: #{tpu_custom_call.1} parent=1 // pred_check
      %p553 = pneg %p57
    $region31: #{tpu_custom_call.1} parent=1 // pred_check_branch
      %555 = sbr.rel (%p553) target = $region33
    $region32: #{tpu_custom_call.1} parent=1 // pred_region
      %v556 = vld [vmem:[#allocation2] sm:$0xff]
      %v557 = vld [vmem:[#allocation2 + $0x8] sm:$0xff]
      %558 = vst [vmem:[#allocation9] sm:$0xff] %v556
      %559 = vst [vmem:[#allocation9 + $0x8] sm:$0xff] %v557
    $region33: #{tpu_custom_call.1} parent=1 // pred_fallthru
      _
    // Predicated region
    $region34: #{tpu_custom_call.1} parent=1 // pred_check
      _
    $region35: #{tpu_custom_call.1} parent=1 // pred_check_branch
      %561 = sbr.rel (0) target = $region37
    $region36: #{tpu_custom_call.1} parent=1 // pred_region
      %s563 = ssub.s32 256, 256
      %564 = vsyncadd [#allocation5], %s563
      %s565 = sshll.u32 [#allocation9], 4
      %s566 = int_to_ptr.vmem [resolvable:$true] %s565
      %571 = dma.vmem_to_hbm [thread:$0]  %s566, 256, %s3, [#allocation5], 128, 128, 8
    $region37: #{tpu_custom_call.1} parent=1 // pred_fallthru
      _
    // Predicated region
    $region38: #{tpu_custom_call.1} parent=1 // pred_check
      _
    $region39: #{tpu_custom_call.1} parent=1 // pred_check_branch
      %573 = sbr.rel (0) target = $region41
    $region40: #{tpu_custom_call.1} parent=1 // pred_region
      %574 = dma.done [#allocation5], 256
    $region41: #{tpu_custom_call.1} parent=1 // pred_fallthru
      _
    %575 = vsyncpa [#allocation4], 1
    %576 = vsyncpa [#allocation7], 1
    %577 = vsyncpa [#allocation5], 1

</llo_original>
